<compile_context>
chip_gen: v7x
topology: tpu7x:2x2x1
jax: 0.10.0
libtpu: 0.0.40
codegen_flags: <defaults>
</compile_context>

<pallas_src>
import functools

import jax
import jax.numpy as jnp
import numpy as np
from jax import lax
from jax.experimental import pallas as pl
from jax.experimental.pallas import tpu as pltpu


def _focal_factor(pt, gamma):
    """(1 - pt) ** gamma, specialized on the static gamma (no jnp.power)."""
    one_minus = jnp.maximum(1.0 - pt, 0.0)     # clamp: pt can round above 1
    g = float(gamma)
    if g == 0.0:
        return jnp.ones_like(pt)
    if g == 1.0:
        return one_minus
    if g == float(int(g)) and 1 < int(g) <= 4:  # small integer exponents
        r = one_minus
        for _ in range(int(g) - 1):
            r = r * one_minus
        return r
    # general float gamma via EUP: exp(g * log1p(-min(pt, 1)))  (NaN-free)
    return jnp.exp(g * jnp.log1p(-jnp.minimum(pt, 1.0)))


def _cb_focal_kernel(t_ref, x_ref, a_ref, out_ref, acc_ref, *,
                     gamma, n_valid, block_n):
    i = pl.program_id(1)                                 # step within slice
    tile = pl.program_id(0) * pl.num_programs(1) + i     # global batch tile

    @pl.when(i == 0)
    def _init():
        acc_ref[...] = jnp.zeros_like(acc_ref)

    x = x_ref[...].astype(jnp.float32)           # (block_n, C), upcast in-vreg
    t = t_ref[...]                               # (block_n, 1) int32
    alpha = a_ref[...]                           # (1, C) float32

    # logsumexp along classes (lane axis); log_probs never materialized.
    m = jnp.max(x, axis=1, keepdims=True)
    lse = m + jnp.log(jnp.sum(jnp.exp(x - m), axis=1, keepdims=True))

    # one-hot gather of the target logit and the class weight
    col = lax.broadcasted_iota(jnp.int32, x.shape, 1)
    onehot = (col == t)                                          # (block_n, C)
    x_t = jnp.sum(jnp.where(onehot, x, 0.0), axis=1, keepdims=True)
    alpha_t = jnp.sum(jnp.where(onehot, alpha, 0.0), axis=1, keepdims=True)

    log_pt = x_t - lse                           # (block_n, 1)
    pt = jnp.exp(log_pt)

    loss = -alpha_t * _focal_factor(pt, gamma) * log_pt

    # mask rows past the true batch size (ragged last block -> garbage data)
    row = lax.broadcasted_iota(jnp.int32, (block_n, 1), 0) + tile * block_n
    loss = jnp.where(row < n_valid, loss, 0.0)   # mask BEFORE accumulation

    acc_ref[...] += loss                         # vector partial, no XLU reduce

    @pl.when(i == pl.num_programs(1) - 1)
    def _finalize():
        part = jnp.sum(acc_ref[...])             # single reduce per slice
        r = lax.broadcasted_iota(jnp.int32, (8, 128), 0)
        c = lax.broadcasted_iota(jnp.int32, (8, 128), 1)
        out_ref[...] = jnp.where((r == 0) & (c == 0), part, 0.0)


def make_cb_alpha(samples_per_class, beta=0.999):
    """Deterministic class-balanced weights, identical to the PyTorch __init__."""
    samples_per_class = np.asarray(samples_per_class, dtype=np.float64)
    effective_num = 1.0 - np.power(beta, samples_per_class)
    weights = (1.0 - beta) / effective_num
    weights = weights / np.sum(weights) * len(samples_per_class)
    return jnp.asarray(weights, dtype=jnp.float32)


def _vmem_capacity_bytes():
    try:
        return int(pltpu.get_tpu_info().vmem_capacity_bytes)
    except Exception:
        return 64 * 1024 * 1024          # conservative (v7x-sized) fallback


def _pick_block_n(n, c, itemsize, vmem_bytes):
    """Largest batch tile (multiple of 8, <= n) whose double-buffered logits
    stream fits comfortably in this generation's VMEM."""
    budget = vmem_bytes // 4                   # logits stream share of VMEM
    per_row = 2 * max(1, c) * itemsize         # 2 pipeline buffers
    target = int(max(8, min(budget // per_row, 2048)))
    if n < 8:
        return n                               # block == full array dim
    block_n = min(target, (n // 8) * 8)
    return max(8, (block_n // 8) * 8)


def class_balanced_focal_loss(inputs, targets, alpha, gamma=1.0,
                              reduction='mean', block_n=None):
    # Replicate `inputs.view(N, C)` for dim > 2 (trailing dims must be size 1).
    if inputs.ndim > 2:
        inputs = inputs.reshape(inputs.shape[0], inputs.shape[1])
    n, c = inputs.shape

    itemsize = jnp.dtype(inputs.dtype).itemsize
    vmem_bytes = _vmem_capacity_bytes()
    if block_n is None:
        block_n = _pick_block_n(n, c, itemsize, vmem_bytes)
    block_n = int(block_n)

    num_tiles = pl.cdiv(n, block_n)
    # Split the batch across two TensorCores when it divides cleanly (v7x);
    # harmless (sequential) on single-core chips.
    n_slices = 2 if (num_tiles >= 2 and num_tiles % 2 == 0) else 1
    steps = num_tiles // n_slices

    targets2 = targets.reshape(n, 1).astype(jnp.int32)
    alpha2 = alpha.reshape(1, c).astype(jnp.float32)

    # VMEM need: double-buffered logits + targets + accumulator + alpha + slack
    need = (2 * block_n * c * itemsize
            + 2 * block_n * 128 * 4
            + block_n * 128 * 4
            + 2 * 8 * max(c, 128) * 4)
    vmem_limit = int(min(vmem_bytes * 3 // 4,
                         max(2 * need + (4 << 20), 32 << 20)))

    kernel = functools.partial(_cb_focal_kernel, gamma=float(gamma),
                               n_valid=n, block_n=block_n)

    partials = pl.pallas_call(
        kernel,
        out_shape=jax.ShapeDtypeStruct((n_slices * 8, 128), jnp.float32),
        grid_spec=pltpu.PrefetchScalarGridSpec(
            num_scalar_prefetch=0,
            grid=(n_slices, steps),
            in_specs=[
                pl.BlockSpec((block_n, 1), lambda s, i: (s * steps + i, 0)),
                pl.BlockSpec((block_n, c), lambda s, i: (s * steps + i, 0)),
                pl.BlockSpec((1, c), lambda s, i: (0, 0)),
            ],
            out_specs=pl.BlockSpec((8, 128), lambda s, i: (s, 0)),
            scratch_shapes=[pltpu.VMEM((block_n, 1), jnp.float32)],
        ),
        compiler_params=pltpu.CompilerParams(
            dimension_semantics=("parallel", "arbitrary"),
            vmem_limit_bytes=vmem_limit),
    )(targets2, inputs, alpha2)

    # Each slice's partial sits at one element of its (8,128) row, rest zeros.
    total = jnp.sum(partials)
    if reduction == 'mean':
        return total / jnp.float32(n)
    # TODO(synk): reduction='none' (per-sample vector) not implemented; 'sum'
    # and 'mean' match the PyTorch module.
    return total


def _reference(inputs, targets, alpha, gamma=1.0, reduction='mean'):
    if inputs.ndim > 2:
        inputs = inputs.reshape(inputs.shape[0], inputs.shape[1])
    log_probs = jax.nn.log_softmax(inputs.astype(jnp.float32), axis=1)
    probs = jnp.exp(log_probs)
    t = targets.reshape(-1)
    log_pt = jnp.take_along_axis(log_probs, t[:, None], axis=1)[:, 0]
    pt = jnp.take_along_axis(probs, t[:, None], axis=1)[:, 0]
    alpha_t = alpha[t]
    loss = -alpha_t * (1.0 - pt) ** gamma * log_pt
    if reduction == 'mean':
        return loss.mean()
    return loss.sum()


if __name__ == "__main__":
    # Small deterministic example: batch=10 (tests ragged last block), 4 classes.
    key = jax.random.PRNGKey(0)
    k1, k2 = jax.random.split(key)
    N, C = 10, 4
    samples_per_class = [50, 10, 30, 5]
    beta, gamma = 0.999, 1.0

    logits = jax.random.normal(k1, (N, C), dtype=jnp.float32)
    targets = jax.random.randint(k2, (N,), 0, C, dtype=jnp.int32)
    alpha = make_cb_alpha(samples_per_class, beta=beta)

    loss = class_balanced_focal_loss(logits, targets, alpha,
                                     gamma=gamma, reduction='mean')
    loss = jax.block_until_ready(loss)

    ref = _reference(logits, targets, alpha, gamma=gamma, reduction='mean')
    assert np.allclose(np.asarray(loss), np.asarray(ref), rtol=1e-5, atol=1e-6), \
        (loss, ref)

    print("KERNEL_OK")
</pallas_src>

<mosaic_0001>
module attributes {stable_mosaic.version = 11 : i64} {
  func.func @_cb_focal_kernel(%arg0: i32, %arg1: i32, %arg2: memref<8x1xi32, #tpu.memory_space<vmem>>, %arg3: memref<8x4xf32, #tpu.memory_space<vmem>>, %arg4: memref<1x4xf32, #tpu.memory_space<vmem>>, %arg5: memref<8x128xf32, #tpu.memory_space<vmem>>, %arg6: memref<8x1xf32, #tpu.memory_space<vmem>>) attributes {dimension_semantics = [#tpu.dimension_semantics<parallel>, #tpu.dimension_semantics<arbitrary>], iteration_bounds = array<i64: 2, 1>, scalar_prefetch = 0 : i64, scratch_operands = 1 : i64, tpu.core_type = #tpu.core_type<tc>, window_params = [{transform_indices = @transform_0, window_bounds = array<i64: 8, 1>}, {transform_indices = @transform_1, window_bounds = array<i64: 8, 4>}, {pipeline_mode = #tpu.pipeline_mode<synchronous>, transform_indices = @transform_2, window_bounds = array<i64: 1, 4>}, {transform_indices = @transform_3, window_bounds = array<i64: 8, 128>}]} {
    %c1_i32 = arith.constant 1 : i32
    %0 = arith.muli %arg0, %c1_i32 : i32
    %1 = arith.addi %0, %arg1 : i32
    %c0_i32 = arith.constant 0 : i32
    %2 = arith.cmpi eq, %arg1, %c0_i32 : i32
    %3 = arith.extui %2 : i1 to i32
    %c0_i32_0 = arith.constant 0 : i32
    %4 = arith.cmpi ne, %3, %c0_i32_0 : i32
    scf.if %4 {
      %cst_21 = arith.constant 0.000000e+00 : f32
      %54 = vector.broadcast %cst_21 : f32 to vector<8x1xf32>
      %c0_22 = arith.constant 0 : index
      %c0_23 = arith.constant 0 : index
      %55 = vector.load %arg6[%c0_22, %c0_23] : memref<8x1xf32, #tpu.memory_space<vmem>>, vector<8x1xf32>
      tpu.vector_store %arg6[%c0_22, %c0_23], %54 {strides = array<i32>} : memref<8x1xf32, #tpu.memory_space<vmem>>, vector<8x1xf32>,
    } else {
    }
    %c0 = arith.constant 0 : index
    %c0_1 = arith.constant 0 : index
    %5 = vector.load %arg3[%c0, %c0_1] : memref<8x4xf32, #tpu.memory_space<vmem>>, vector<8x4xf32>
    %c0_2 = arith.constant 0 : index
    %c0_3 = arith.constant 0 : index
    %6 = vector.load %arg2[%c0_2, %c0_3] : memref<8x1xi32, #tpu.memory_space<vmem>>, vector<8x1xi32>
    %c0_4 = arith.constant 0 : index
    %c0_5 = arith.constant 0 : index
    %7 = vector.load %arg4[%c0_4, %c0_5] : memref<1x4xf32, #tpu.memory_space<vmem>>, vector<1x4xf32>
    %cst = arith.constant dense<0xFF800000> : vector<8xf32>
    %8 = vector.multi_reduction <maximumf>, %5, %cst [1] : vector<8x4xf32> to vector<8xf32>
    %9 = vector.shape_cast %8 : vector<8xf32> to vector<8x1xf32>
    %10 = vector.broadcast %9 : vector<8x1xf32> to vector<8x4xf32>
    %11 = arith.subf %5, %10 : vector<8x4xf32>
    %12 = math.exp %11 : vector<8x4xf32>
    %cst_6 = arith.constant dense<0.000000e+00> : vector<8xf32>
    %13 = vector.multi_reduction <add>, %12, %cst_6 [1] : vector<8x4xf32> to vector<8xf32>
    %14 = vector.shape_cast %13 : vector<8xf32> to vector<8x1xf32>
    %15 = math.log %14 : vector<8x1xf32>
    %16 = arith.addf %9, %15 : vector<8x1xf32>
    %17 = tpu.iota {dimensions = array<i32: 1>} : vector<8x4xi32>
    %18 = vector.broadcast %6 : vector<8x1xi32> to vector<8x4xi32>
    %19 = arith.cmpi eq, %17, %18 : vector<8x4xi32>
    %cst_7 = arith.constant 0.000000e+00 : f32
    %20 = vector.broadcast %cst_7 : f32 to vector<8x4xf32>
    %21 = arith.select %19, %5, %20 : vector<8x4xi1>, vector<8x4xf32>
    %cst_8 = arith.constant dense<0.000000e+00> : vector<8xf32>
    %22 = vector.multi_reduction <add>, %21, %cst_8 [1] : vector<8x4xf32> to vector<8xf32>
    %23 = vector.shape_cast %22 : vector<8xf32> to vector<8x1xf32>
    %cst_9 = arith.constant 0.000000e+00 : f32
    %24 = vector.shape_cast %7 : vector<1x4xf32> to vector<1x4xf32>
    %25 = vector.broadcast %24 : vector<1x4xf32> to vector<8x4xf32>
    %26 = vector.broadcast %cst_9 : f32 to vector<8x4xf32>
    %27 = arith.select %19, %25, %26 : vector<8x4xi1>, vector<8x4xf32>
    %cst_10 = arith.constant dense<0.000000e+00> : vector<8xf32>
    %28 = vector.multi_reduction <add>, %27, %cst_10 [1] : vector<8x4xf32> to vector<8xf32>
    %29 = vector.shape_cast %28 : vector<8xf32> to vector<8x1xf32>
    %30 = arith.subf %23, %16 : vector<8x1xf32>
    %31 = math.exp %30 : vector<8x1xf32>
    %cst_11 = arith.constant 0.000000e+00 : f32
    %32 = vector.broadcast %cst_11 : f32 to vector<8x1xf32>
    %33 = arith.subf %32, %29 : vector<8x1xf32>
    %cst_12 = arith.constant 1.000000e+00 : f32
    %34 = vector.broadcast %cst_12 : f32 to vector<8x1xf32>
    %35 = arith.subf %34, %31 : vector<8x1xf32>
    %cst_13 = arith.constant 0.000000e+00 : f32
    %36 = vector.broadcast %cst_13 : f32 to vector<8x1xf32>
    %37 = arith.maximumf %35, %36 : vector<8x1xf32>
    %38 = arith.mulf %33, %37 : vector<8x1xf32>
    %39 = arith.mulf %38, %30 : vector<8x1xf32>
    %40 = tpu.iota {dimensions = array<i32: 0>} : vector<8x1xi32>
    %c8_i32 = arith.constant 8 : i32
    %41 = arith.muli %1, %c8_i32 : i32
    %42 = vector.broadcast %41 : i32 to vector<8x1xi32>
    %43 = arith.addi %40, %42 : vector<8x1xi32>
    %c10_i32 = arith.constant 10 : i32
    %44 = vector.broadcast %c10_i32 : i32 to vector<8x1xi32>
    %45 = arith.cmpi slt, %43, %44 : vector<8x1xi32>
    %cst_14 = arith.constant 0.000000e+00 : f32
    %46 = vector.broadcast %cst_14 : f32 to vector<8x1xf32>
    %47 = arith.select %45, %39, %46 : vector<8x1xi1>, vector<8x1xf32>
    %c0_15 = arith.constant 0 : index
    %c0_16 = arith.constant 0 : index
    %48 = vector.load %arg6[%c0_15, %c0_16] : memref<8x1xf32, #tpu.memory_space<vmem>>, vector<8x1xf32>
    %49 = arith.addf %48, %47 : vector<8x1xf32>
    %c0_17 = arith.constant 0 : index
    %c0_18 = arith.constant 0 : index
    %50 = vector.load %arg6[%c0_17, %c0_18] : memref<8x1xf32, #tpu.memory_space<vmem>>, vector<8x1xf32>
    tpu.vector_store %arg6[%c0_17, %c0_18], %49 {strides = array<i32>} : memref<8x1xf32, #tpu.memory_space<vmem>>, vector<8x1xf32>,
    %c0_i32_19 = arith.constant 0 : i32
    %51 = arith.cmpi eq, %arg1, %c0_i32_19 : i32
    %52 = arith.extui %51 : i1 to i32
    %c0_i32_20 = arith.constant 0 : i32
    %53 = arith.cmpi ne, %52, %c0_i32_20 : i32
    scf.if %53 {
      %c0_21 = arith.constant 0 : index
      %c0_22 = arith.constant 0 : index
      %54 = vector.load %arg6[%c0_21, %c0_22] : memref<8x1xf32, #tpu.memory_space<vmem>>, vector<8x1xf32>
      %55 = vector.shape_cast %54 : vector<8x1xf32> to vector<1x8x1xf32>
      %cst_23 = arith.constant dense<0.000000e+00> : vector<1xf32>
      %56 = vector.multi_reduction <add>, %55, %cst_23 [1, 2] : vector<1x8x1xf32> to vector<1xf32>
      %57 = vector.shape_cast %56 : vector<1xf32> to vector<1x1x1xf32>
      %58 = vector.extract %57[0, 0, 0] : f32 from vector<1x1x1xf32>
      %59 = tpu.iota {dimensions = array<i32: 0>} : vector<8x128xi32>
      %60 = tpu.iota {dimensions = array<i32: 1>} : vector<8x128xi32>
      %c0_i32_24 = arith.constant 0 : i32
      %61 = vector.broadcast %c0_i32_24 : i32 to vector<8x128xi32>
      %62 = arith.cmpi eq, %59, %61 : vector<8x128xi32>
      %c0_i32_25 = arith.constant 0 : i32
      %63 = vector.broadcast %c0_i32_25 : i32 to vector<8x128xi32>
      %64 = arith.cmpi eq, %60, %63 : vector<8x128xi32>
      %65 = arith.andi %62, %64 : vector<8x128xi1>
      %cst_26 = arith.constant 0.000000e+00 : f32
      %66 = vector.broadcast %58 : f32 to vector<8x128xf32>
      %67 = vector.broadcast %cst_26 : f32 to vector<8x128xf32>
      %68 = arith.select %65, %66, %67 : vector<8x128xi1>, vector<8x128xf32>
      %c0_27 = arith.constant 0 : index
      %c0_28 = arith.constant 0 : index
      %69 = vector.load %arg5[%c0_27, %c0_28] : memref<8x128xf32, #tpu.memory_space<vmem>>, vector<8x128xf32>
      tpu.vector_store %arg5[%c0_27, %c0_28], %68 {strides = array<i32>} : memref<8x128xf32, #tpu.memory_space<vmem>>, vector<8x128xf32>,
    } else {
    }
    return
  }
  func.func @transform_0(%arg0: i32, %arg1: i32) -> (i32, i32) {
    %c1_i32 = arith.constant 1 : i32
    %0 = arith.muli %arg0, %c1_i32 : i32
    %1 = arith.addi %0, %arg1 : i32
    %c0_i32 = arith.constant 0 : i32
    %c0_i32_0 = arith.constant 0 : i32
    return %1, %c0_i32 : i32, i32
  }
  func.func @transform_1(%arg0: i32, %arg1: i32) -> (i32, i32) {
    %c1_i32 = arith.constant 1 : i32
    %0 = arith.muli %arg0, %c1_i32 : i32
    %1 = arith.addi %0, %arg1 : i32
    %c0_i32 = arith.constant 0 : i32
    %c0_i32_0 = arith.constant 0 : i32
    return %1, %c0_i32 : i32, i32
  }
  func.func @transform_2(%arg0: i32, %arg1: i32) -> (i32, i32) {
    %c0_i32 = arith.constant 0 : i32
    %c0_i32_0 = arith.constant 0 : i32
    %c0_i32_1 = arith.constant 0 : i32
    return %c0_i32, %c0_i32_0 : i32, i32
  }
  func.func @transform_3(%arg0: i32, %arg1: i32) -> (i32, i32) {
    %c0_i32 = arith.constant 0 : i32
    %c0_i32_0 = arith.constant 0 : i32
    return %arg0, %c0_i32 : i32, i32
  }
}

</mosaic_0001>

<llo_original>
// kernel: tpu_custom_call.1
$region0: #{tpu_custom_call.1}
  #allocation0 [shape = 'u32[]', space=smem, size = 0x4, offset = 0x4, fixed_abs, tag = 'smem constant byte address 0x4 - core index']
  #allocation1 [shape = 'u32[144,128]{1,0:T(1,128)}', space=vmem, size = 0x12000, scoped, tag = 'internal scratch']
  #allocation2 [shape = 'f32[8,1]{1,0:T(8,128)}', space=vmem, size = 0x1000, scoped, tag = 'scratch operand']
  %s0 = inlined_call_operand.vmem [shape: s32[10,1], index: 0, kind: input, shape index: {}]
  %s1 = inlined_call_operand.vmem [shape: f32[10,4], index: 1, kind: input, shape index: {}]
  %s2 = inlined_call_operand.vmem [shape: f32[1,4], index: 2, kind: input, shape index: {}]
  %s3 = inlined_call_operand.hbm [shape: f32[16,128], index: 3, kind: output, shape index: {}]
  %s4 = sld [smem:[#allocation0]]
  $region53: #{tpu_custom_call.1} parent=0
    _
  %s6 = ssub.s32 1, %s4
  %s7 = scalar_select 0, %s6, %s4
  $region1: #{tpu_custom_call.1} parent=0
    #allocation3 [shape = 'u8[8192]{0}', space=vmem, size = 0x2000, scoped, tag = 'output window, operand 0']
    #allocation4 [shape = 's32[2]{0}', space=sflag, size = 0x8, scoped, tag = 'scoped memory for tpu_custom_call.1']
    %8 = vsyncpa [#allocation4], 0
    %s9 = scalar_lea.sflag [#allocation4], 1
    %10 = vsyncpa %s9, 0
    loop: start=0, step=1, limit=4
    $region2: #{tpu_custom_call.1} parent=1 // loop_pre_header
      _
    $region3: #{tpu_custom_call.1} parent=1 // loop_header
      %s12 = sphi 0, %s16
      %p13 = scmp.ge.s32.totalorder %s12, 4
      %s19 = sphi 0, %s31
      %s20 = sphi 0, %s27
      %s21 = sphi 0, %s19
      %s22 = sphi 0, %s20
      %s23 = sphi 0, %s21
      %s24 = sphi 0, %s22
      %s36 = sphi 0, %s38
      %s39 = sphi 0, %s36
      %s40 = sphi 0, %s39
      %s56 = sphi 0, %s40
      %s64 = sphi 0, %s66
      %s67 = sphi 0, %s64
      %s68 = sphi 0, %s67
      %s84 = sphi 0, %s68
      %s88 = sphi 0, %s88
      %s90 = sphi 0, %s88
      %s91 = sphi 0, %s90
      %s105 = sphi 0, %s91
      %s111 = sphi 0, %s113
      %s114 = sphi 0, %s111
      %s115 = sphi 0, %s114
      %s131 = sphi 0, %s115
    $region4: #{tpu_custom_call.1} parent=1 // loop_header_branch
      %15 = sbr.rel (%p13) target = $region8
    $region5: #{tpu_custom_call.1} parent=1 // loop_body
      %s17 = ssub.s32 %s12, 1
      %s18 = ssub.s32 %s12, 2
      %s25 = sadd.s32 1, %s20
      %p26 = scmp.ge.s32.totalorder %s25, 1
      %s27 = scalar_select %p26, 0, %s25
      %s28 = sadd.s32 1, %s19
      %s29 = scalar_select %p26, %s28, %s19
      %p30 = scmp.ge.s32.totalorder %s29, 2
      %s31 = scalar_select %p30, 0, %s29
      %s32 = sadd.s32 %s19, %s20
      %s33 = sadd.s32 %s31, %s27
      %s34 = ssub.s32 %s32, %s33
      %p35 = scmp.eq.s32.totalorder %s34, 0
      %s37 = sadd.s32 %s36, 1
      %s38 = scalar_select %p35, %s36, %s37
      %p41 = pneg %p35
      %p42 = scmp.eq.s32.totalorder %s12, 1
      %p43 = por %p41, %p42
      %p44 = scmp.ne.s32.totalorder %s36, %s39
      %p45 = scmp.eq.s32.totalorder %s12, 0
      %p46 = por %p44, %p45
      %p47 = scmp.ne.s32.totalorder %s36, %s39
      %p48 = scmp.eq.s32.totalorder %s17, 1
      %p49 = por %p47, %p48
      %p50 = scmp.ne.s32.totalorder %s39, %s40
      %p51 = scmp.eq.s32.totalorder %s17, 0
      %p52 = por %p50, %p51
      %p53 = scmp.ne.s32.totalorder %s39, %s40
      %p54 = scmp.eq.s32.totalorder %s18, 1
      %p55 = por %p53, %p54
      %p57 = scmp.ne.s32.totalorder %s40, %s56
      %p58 = scmp.eq.s32.totalorder %s18, 0
      %p59 = por %p57, %p58
      %s60 = sadd.s32 %s19, %s20
      %s61 = sadd.s32 %s31, %s27
      %s62 = ssub.s32 %s60, %s61
      %p63 = scmp.eq.s32.totalorder %s62, 0
      %s65 = sadd.s32 %s64, 1
      %s66 = scalar_select %p63, %s64, %s65
      %p69 = pneg %p63
      %p70 = scmp.eq.s32.totalorder %s12, 1
      %p71 = por %p69, %p70
      %p72 = scmp.ne.s32.totalorder %s64, %s67
      %p73 = scmp.eq.s32.totalorder %s12, 0
      %p74 = por %p72, %p73
      %p75 = scmp.ne.s32.totalorder %s64, %s67
      %p76 = scmp.eq.s32.totalorder %s17, 1
      %p77 = por %p75, %p76
      %p78 = scmp.ne.s32.totalorder %s67, %s68
      %p79 = scmp.eq.s32.totalorder %s17, 0
      %p80 = por %p78, %p79
      %p81 = scmp.ne.s32.totalorder %s67, %s68
      %p82 = scmp.eq.s32.totalorder %s18, 1
      %p83 = por %p81, %p82
      %p85 = scmp.ne.s32.totalorder %s68, %s84
      %p86 = scmp.eq.s32.totalorder %s18, 0
      %p87 = por %p85, %p86
      %s89 = sadd.s32 %s88, 1
      %p92 = scmp.eq.s32.totalorder %s12, 1
      %p93 = scmp.ne.s32.totalorder %s88, %s90
      %p94 = scmp.eq.s32.totalorder %s12, 0
      %p95 = por %p93, %p94
      %p96 = scmp.ne.s32.totalorder %s88, %s90
      %p97 = scmp.eq.s32.totalorder %s17, 1
      %p98 = por %p96, %p97
      %p99 = scmp.ne.s32.totalorder %s90, %s91
      %p100 = scmp.eq.s32.totalorder %s17, 0
      %p101 = por %p99, %p100
      %p102 = scmp.ne.s32.totalorder %s90, %s91
      %p103 = scmp.eq.s32.totalorder %s18, 1
      %p104 = por %p102, %p103
      %p106 = scmp.ne.s32.totalorder %s91, %s105
      %p107 = scmp.eq.s32.totalorder %s18, 0
      %p108 = por %p106, %p107
      %s109 = ssub.s32 %s19, %s31
      %p110 = scmp.eq.s32.totalorder %s109, 0
      %s112 = sadd.s32 %s111, 1
      %s113 = scalar_select %p110, %s111, %s112
      %p116 = pneg %p110
      %p117 = scmp.eq.s32.totalorder %s12, 1
      %p118 = por %p116, %p117
      %p119 = scmp.ne.s32.totalorder %s111, %s114
      %p120 = scmp.eq.s32.totalorder %s12, 0
      %p121 = por %p119, %p120
      %p122 = scmp.ne.s32.totalorder %s111, %s114
      %p123 = scmp.eq.s32.totalorder %s17, 1
      %p124 = por %p122, %p123
      %p125 = scmp.ne.s32.totalorder %s114, %s115
      %p126 = scmp.eq.s32.totalorder %s17, 0
      %p127 = por %p125, %p126
      %p128 = scmp.ne.s32.totalorder %s114, %s115
      %p129 = scmp.eq.s32.totalorder %s18, 1
      %p130 = por %p128, %p129
      %p132 = scmp.ne.s32.totalorder %s115, %s131
      %p133 = scmp.eq.s32.totalorder %s18, 0
      %p134 = por %p132, %p133
      %p135 = scmp.le.s32.totalorder 1, %s12
      %p136 = scmp.lt.s32.totalorder %s12, 3
      %p137 = pnand %p135, %p136
      %p138 = pneg %p137
      // Predicated region
      $region9: #{tpu_custom_call.1} parent=5 // pred_check
        _
      $region10: #{tpu_custom_call.1} parent=5 // pred_check_branch
        %140 = sbr.rel (%p137) target = $region12
      $region11: #{tpu_custom_call.1} parent=5 // pred_region
        %s141 = ssub.s32 %s12, 1
        // Predicated region
        $region13: #{tpu_custom_call.1} parent=11 // pred_check
          %p142 = pneg %p101
        $region14: #{tpu_custom_call.1} parent=11 // pred_check_branch
          %144 = sbr.rel (%p142) target = $region16
        $region15: #{tpu_custom_call.1} parent=11 // pred_region
          _
        $region16: #{tpu_custom_call.1} parent=11 // pred_fallthru
          _
      $region12: #{tpu_custom_call.1} parent=5 // pred_fallthru
        _
      %p145 = scmp.lt.s32.totalorder %s12, 2
      // Predicated region
      $region17: #{tpu_custom_call.1} parent=5 // pred_check
        %p146 = pneg %p145
      $region18: #{tpu_custom_call.1} parent=5 // pred_check_branch
        %148 = sbr.rel (%p146) target = $region20
      $region19: #{tpu_custom_call.1} parent=5 // pred_region
        // Predicated region
        $region21: #{tpu_custom_call.1} parent=19 // pred_check
          %p149 = pneg %p46
        $region22: #{tpu_custom_call.1} parent=19 // pred_check_branch
          %151 = sbr.rel (%p149) target = $region24
        $region23: #{tpu_custom_call.1} parent=19 // pred_region
          %s152 = sadd.s32 %s19, %s20
          %p153 = scmp.lt.s32.totalorder %s152, 1
          %s154 = scalar_select %p153, %s152, 1
          %s155 = smul.addr %s154, 8
          %s156 = scalar_lea.vmem %s0, %s155
          %s157 = sadd.s32 %s19, %s20
        $region24: #{tpu_custom_call.1} parent=19 // pred_fallthru
          _
        // Predicated region
        $region25: #{tpu_custom_call.1} parent=19 // pred_check
          %p158 = pneg %p74
        $region26: #{tpu_custom_call.1} parent=19 // pred_check_branch
          %160 = sbr.rel (%p158) target = $region28
        $region27: #{tpu_custom_call.1} parent=19 // pred_region
          %s161 = sadd.s32 %s19, %s20
          %p162 = scmp.lt.s32.totalorder %s161, 1
          %s163 = scalar_select %p162, %s161, 1
          %s164 = smul.addr %s163, 8
          %s165 = scalar_lea.vmem %s1, %s164
          %s166 = sadd.s32 %s19, %s20
        $region28: #{tpu_custom_call.1} parent=19 // pred_fallthru
          _
      $region20: #{tpu_custom_call.1} parent=5 // pred_fallthru
        _
      %p167 = scmp.le.s32.totalorder 1, %s12
      %p168 = scmp.lt.s32.totalorder %s12, 3
      %p169 = pnand %p167, %p168
      %p170 = pneg %p169
      // Predicated region
      $region29: #{tpu_custom_call.1} parent=5 // pred_check
        _
      $region30: #{tpu_custom_call.1} parent=5 // pred_check_branch
        %172 = sbr.rel (%p169) target = $region32
      $region31: #{tpu_custom_call.1} parent=5 // pred_region
        %s173 = ssub.s32 %s12, 1
        %s174 = sadd.s32 %s21, %s22
        %p175 = scmp.lt.s32.totalorder %s174, 1
        %s176 = scalar_select %p175, %s174, 1
        %s177 = smul.addr %s176, 8
        %s178 = scalar_lea.vmem %s0, %s177
        %p179 = pneg %p52
        %p180 = pneg %p49
        %s181 = sadd.s32 %s21, %s22
        %p182 = scmp.lt.s32.totalorder %s181, 1
        %s183 = scalar_select %p182, %s181, 1
        %s184 = smul.addr %s183, 8
        %s185 = scalar_lea.vmem %s1, %s184
        %p186 = pneg %p80
        %p187 = pneg %p77
        %p188 = pneg %p101
        %p189 = pneg %p98
        %p190 = pneg %p127
        %p191 = pneg %p124
        %s192 = sand.u32 %s114, 1
        %s193 = scalar_lea.sflag [#allocation4], %s192
        %s194 = sand.u32 %s114, 1
        %s195 = smul.addr %s194, 8
        %s196 = scalar_lea.vmem [#allocation3], %s195
        %s197 = sadd.s32 %s21, %s22
        %p198 = scmp.lt.s32.totalorder %s197, 1
        %s199 = scalar_select %p198, %s197, 1
        %s200 = smul.addr %s199, 8
        %s201 = scalar_lea.vmem %s0, %s200
        %s202 = sadd.s32 %s21, %s22
        %s203 = sadd.s32 %s21, %s22
        %p204 = scmp.lt.s32.totalorder %s203, 1
        %s205 = scalar_select %p204, %s203, 1
        %s206 = smul.addr %s205, 8
        %s207 = scalar_lea.vmem %s1, %s206
        %s208 = sadd.s32 %s21, %s22
        %s209 = sadd.s32 %s21, %s22
        %p210 = scmp.eq.s32.totalorder %s22, 0
        // Predicated region
        $region33: #{tpu_custom_call.1} parent=31 // pred_check
          %p211 = pneg %p210
        $region34: #{tpu_custom_call.1} parent=31 // pred_check_branch
          %213 = sbr.rel (%p211) target = $region36
        $region35: #{tpu_custom_call.1} parent=31 // pred_region
          %vm214 = vcmask 7168
          %215 = vst.msk [vmem:[#allocation2] sm:$0xff] %vm214, 0.0
        $region36: #{tpu_custom_call.1} parent=31 // pred_fallthru
          _
        %v216 = vld [vmem:[%s207] sm:$0xff]
        %v217 = vld [vmem:[%s201] sm:$0xff]
        %v218 = vld [vmem:[%s2] sm:$0x1]
        %vm219 = vcmask 31744
        %v220 = vsel %vm219, %v216, -inf
        %221 = vmax.xlane.f32.xlu0 %v220
        %v222 = vpop.xlane.xlu0 %221
        %v223 = vsub.f32 %v216, %v222
        %v224 = vmul.f32 %v223, 1.442695
        %v225 = vpow.pop %v224
        %v226 = vsel %vm219, %v225, 0.0
        %227 = vadd.xlane.f32.xlu0 %v226
        %v228 = vpop.xlane.xlu0 %227
        %v229 = vlog2.pop %v228
        %v230 = vmul.f32 %v229, 0.6931472
        %v231 = vadd.f32 %v222, %v230
        %v232 = vlaneseq
        %v233 = vand.u32 %v232, 127
        %234 = vset.pattern.permute.xlu0 0
        %235 = vperm.xlu0 %234, %v217
        %v236 = vpop.permute.xlu0 %235
        %vm237 = vcmp.eq.s32.totalorder %v233, %v236
        %v238 = vsel %vm237, %v216, 0.0
        %v239 = vsel %vm219, %v238, 0.0
        %240 = vadd.xlane.f32.xlu0 %v239
        %v241 = vpop.xlane.xlu0 %240
        %v243 = vlaneseq
        %v244 = vshrl.u32 %v243, 7
        %v245 = vsub.s32 0, %v244
        %v246 = vrot.slane %v218, %v245
        %v248 = vsel %vm237, %v246, 0.0
        %v249 = vsel %vm219, %v248, 0.0
        %250 = vadd.xlane.f32.xlu0 %v249
        %v251 = vpop.xlane.xlu0 %250
        %v252 = vsub.f32 %v241, %v231
        %v253 = vmul.f32 %v252, 1.442695
        %v254 = vpow.pop %v253
        %v255 = vsub.f32 0.0, %v251
        %v256 = vsub.f32 1.0, %v254
        %v257 = vmax.f32 %v256, 0.0
        %v258 = vmul.f32 %v255, %v257
        %v259 = vmul.f32 %v258, %v252
        %v260 = vlaneseq
        %v261 = vshrl.u32 %v260, 7
        %s262 = smul.u32 %s209, 8
        %v263 = vstv %s262
        %v264 = vadd.s32 %v261, %v263
        %vm265 = vcmp.lt.s32.totalorder %v264, 10
        %v266 = vsel %vm265, %v259, 0.0
        %v267 = vld [vmem:[#allocation2] sm:$0xff]
        %v268 = vadd.f32 %v267, %v266
        %vm269 = vcmask 7168
        %270 = vst.msk [vmem:[#allocation2] sm:$0xff] %vm269, %v268
        // Predicated region
        $region37: #{tpu_custom_call.1} parent=31 // pred_check
          %p271 = pneg %p210
        $region38: #{tpu_custom_call.1} parent=31 // pred_check_branch
          %273 = sbr.rel (%p271) target = $region40
        $region39: #{tpu_custom_call.1} parent=31 // pred_region
          %v274 = vld [vmem:[#allocation2] sm:$0xff]
          %v275 = vsel %vm269, %v274, 0.0
          %276 = vadd.xlane.f32.xlu0 %v275
          %v277 = vpop.xlane.xlu0 %276
          %v278 = vrot.slane %v277, 4
          %v279 = vadd.f32 %v277, %v278
          %v280 = vrot.slane %v279, 2
          %v281 = vadd.f32 %v279, %v280
          %v282 = vrot.slane %v281, 1
          %v283 = vadd.f32 %v281, %v282
          %s284 = vtos %v283
          %vm285 = vcmp.eq.s32.totalorder %v261, 0
          %vm286 = vcmp.eq.s32.totalorder %v233, 0
          %vm287 = vmand %vm285, %vm286
          %v288 = vstv %s284
          %v289 = vsel %vm287, %v288, 0.0
          %290 = vst [vmem:[%s196] sm:$0xff] %v289
        $region40: #{tpu_custom_call.1} parent=31 // pred_fallthru
          _
        %s291 = sand.u32 %s114, 1
        %s292 = scalar_lea.sflag [#allocation4], %s291
        %s293 = sand.u32 %s114, 1
        %s294 = smul.addr %s293, 8
        %s295 = scalar_lea.vmem [#allocation3], %s294
        // Predicated region
        $region41: #{tpu_custom_call.1} parent=31 // pred_check
          %p296 = pneg %p124
        $region42: #{tpu_custom_call.1} parent=31 // pred_check_branch
          %298 = sbr.rel (%p296) target = $region44
        $region43: #{tpu_custom_call.1} parent=31 // pred_region
          %s300 = ssub.s32 128, 128
          %301 = vsyncadd %s292, %s300
          %s302 = smul.addr %s21, 128
          %s303 = scalar_lea.hbm %s3, %s302
          %s305 = sshll.u32 %s295, 4
          %s306 = int_to_ptr.vmem [resolvable:$true] %s305
          %308 = dma.vmem_to_hbm [thread:$0]  %s306, 128, %s303, %s292
        $region44: #{tpu_custom_call.1} parent=31 // pred_fallthru
          _
      $region32: #{tpu_custom_call.1} parent=5 // pred_fallthru
        _
      %p309 = scmp.le.s32.totalorder 2, %s12
      // Predicated region
      $region45: #{tpu_custom_call.1} parent=5 // pred_check
        %p310 = pneg %p309
      $region46: #{tpu_custom_call.1} parent=5 // pred_check_branch
        %312 = sbr.rel (%p310) target = $region48
      $region47: #{tpu_custom_call.1} parent=5 // pred_region
        %s313 = ssub.s32 %s12, 2
        // Predicated region
        $region49: #{tpu_custom_call.1} parent=47 // pred_check
          %p314 = pneg %p130
        $region50: #{tpu_custom_call.1} parent=47 // pred_check_branch
          %316 = sbr.rel (%p314) target = $region52
        $region51: #{tpu_custom_call.1} parent=47 // pred_region
          %s317 = sand.u32 %s115, 1
          %s318 = scalar_lea.sflag [#allocation4], %s317
          %s319 = sand.u32 %s115, 1
          %s320 = smul.addr %s319, 8
          %s321 = scalar_lea.vmem [#allocation3], %s320
          %322 = dma.done %s318, 128
        $region52: #{tpu_custom_call.1} parent=47 // pred_fallthru
          _
      $region48: #{tpu_custom_call.1} parent=5 // pred_fallthru
        _
    $region6: #{tpu_custom_call.1} parent=1 // loop_footer
      %s16 = sadd.s32 1, %s12
    $region7: #{tpu_custom_call.1} parent=1 // loop_footer_branch
      %11 = sbr.rel target = $region3
    $region8: #{tpu_custom_call.1} parent=1 // loop_exit
      _
    %323 = vsyncpa [#allocation4], 1
    %s324 = scalar_lea.sflag [#allocation4], 1
    %325 = vsyncpa %s324, 1

</llo_original>
